<compile_context>
chip_gen: v6e
topology: v6e:2x2x1
jax: 0.10.0
libtpu: 0.0.40
codegen_flags: <defaults>
</compile_context>

<pallas_src>
import jax
import jax.numpy as jnp
from jax.experimental import pallas as pl
from jax.experimental.pallas import tpu as pltpu

_LANE = 128
_WEIGHT_ORDER = ("w_i3", "w_hrz", "w_hn", "b_i3", "b_hn", "w_fold", "b_fold")


def _round_up(n, m):
    return ((n + m - 1) // m) * m


def _sigmoid(a):
    # sigmoid(a) == 0.5*(tanh(a/2)+1): exact, and the transcendental lands in the
    # EUP slot instead of an exp + f32 divide chain on the VPU.
    return 0.5 * (jnp.tanh(0.5 * a) + 1.0)


def _gru_regressor_kernel(
    x_ref,       # (TB, Dp)
    h_ref,       # (TB, Hp)
    w_i3_ref,    # (Dp, 3*Hp)  x-side weights, gates [r | z | n] along lanes
    w_hrz_ref,   # (Hp, 2*Hp)  h-side weights, gates [r | z]
    w_hn_ref,    # (Hp, Hp)    h-side n-gate weights (separate: result scaled by r)
    b_i3_ref,    # (1, 3*Hp)   [b_ir+b_hr | b_iz+b_hz | b_in]
    b_hn_ref,    # (1, Hp)
    w_fold_ref,  # (Hp, Dp)    fc1∘fc2 folded: fc1_w.T @ fc2_w.T
    b_fold_ref,  # (1, Dp)     fc1_b @ fc2_w.T + fc2_b
    y_ref,       # (TB, Dp)
    outh_ref,    # (TB, Hp)
):
    H = h_ref.shape[-1]                      # padded hidden width (multiple of 128)
    h32 = h_ref[...].astype(jnp.float32)
    # Cast activations to the weight dtype for the MXU (bf16 weights by default);
    # accumulate in f32 and keep all gate / elementwise math in f32.
    xd = x_ref[...].astype(w_i3_ref.dtype)
    hd = h_ref[...].astype(w_hrz_ref.dtype)

    # 3 fused MXU issues instead of 6; slices below are lane-aligned (H % 128 == 0).
    gi = jnp.dot(xd, w_i3_ref[...], preferred_element_type=jnp.float32) + b_i3_ref[...]
    ghrz = jnp.dot(hd, w_hrz_ref[...], preferred_element_type=jnp.float32)
    ghn = jnp.dot(hd, w_hn_ref[...], preferred_element_type=jnp.float32) + b_hn_ref[...]

    r = _sigmoid(gi[:, :H] + ghrz[:, :H])
    z = _sigmoid(gi[:, H:2 * H] + ghrz[:, H:2 * H])
    n = jnp.tanh(gi[:, 2 * H:] + r * ghn)

    # (1 - z) * n + z * h  ==  n + z * (h - n)   (one fewer VPU op)
    h_new = n + z * (h32 - n)

    # Folded fc2(fc1(.)): exact single affine map (no activation in between).
    y = (jnp.dot(h_new.astype(w_fold_ref.dtype), w_fold_ref[...],
                 preferred_element_type=jnp.float32)
         + b_fold_ref[...])

    y_ref[...] = y.astype(y_ref.dtype)
    outh_ref[...] = h_new.astype(outh_ref.dtype)


def prepare_params(raw, weight_dtype=jnp.bfloat16):
    """One-time weight prep (OFF the per-step call path).

    Transpose to (in, out); zero-pad gate width H and output width D (and the
    matching contraction dims) up to multiples of 128; fuse x-side gates into one
    (Dp, 3Hp) matrix and h-side r/z gates into one (Hp, 2Hp) matrix; combine r/z
    biases into one (1, 3Hp) slab; fold fc1∘fc2.  Matmul weights are stored in
    `weight_dtype` (bf16 by default — MXU-native on v5e/v6e/v7x); biases stay f32.
    Zero padding keeps padded lanes of h' exactly 0, so the padded hidden state is
    self-consistent across recurrent steps.
    """
    H = raw["w_hh"].shape[1]
    D = raw["w_ih"].shape[1]
    Hp = _round_up(H, _LANE)
    Dp = _round_up(D, _LANE)

    w_ih_t = raw["w_ih"].T.astype(jnp.float32)    # (D, 3H)
    w_hh_t = raw["w_hh"].T.astype(jnp.float32)    # (H, 3H)
    b_ih, b_hh = raw["b_ih"], raw["b_hh"]

    def gate(mat, g):
        return mat[:, g * H:(g + 1) * H]

    def pad2(m, rows, cols):
        return jnp.pad(m, ((0, rows - m.shape[0]), (0, cols - m.shape[1])))

    def pad_bias(v, cols):
        return jnp.pad(v, (0, cols - v.shape[0])).reshape(1, -1)

    w_i3 = jnp.concatenate([pad2(gate(w_ih_t, g), Dp, Hp) for g in range(3)], axis=1)
    w_hrz = jnp.concatenate([pad2(gate(w_hh_t, g), Hp, Hp) for g in range(2)], axis=1)
    w_hn = pad2(gate(w_hh_t, 2), Hp, Hp)

    b_i3 = jnp.concatenate([
        pad_bias(b_ih[:H] + b_hh[:H], Hp),
        pad_bias(b_ih[H:2 * H] + b_hh[H:2 * H], Hp),
        pad_bias(b_ih[2 * H:], Hp)], axis=1)
    b_hn = pad_bias(b_hh[2 * H:], Hp)

    w_fold = pad2(raw["fc1_w"].T @ raw["fc2_w"].T, Hp, Dp)
    b_fold = pad_bias(raw["fc1_b"] @ raw["fc2_w"].T + raw["fc2_b"], Dp)

    return {
        "w_i3": w_i3.astype(weight_dtype),
        "w_hrz": w_hrz.astype(weight_dtype),
        "w_hn": w_hn.astype(weight_dtype),
        "b_i3": b_i3.astype(jnp.float32),
        "b_hn": b_hn.astype(jnp.float32),
        "w_fold": w_fold.astype(weight_dtype),
        "b_fold": b_fold.astype(jnp.float32),
    }


def output_regressor(x, hidden, prep, *, tile_b=None):
    """x: (B, input_dim), hidden: (B, 2*hid_dim) -> (y (B, input_dim), h' (B, 2*hid_dim)).

    Runs on lane-padded shapes; padding/slicing happens outside the pallas_call.
    For a decode loop, wrap with jax.jit(..., donate_argnums=1) so the aliased
    hidden-state update (input_output_aliases={1:1}) is truly in place.
    """
    B, D = x.shape
    H = hidden.shape[1]
    Hp = prep["w_hn"].shape[1]
    Dp = prep["w_fold"].shape[1]

    xp = x if D == Dp else jnp.pad(x, ((0, 0), (0, Dp - D)))
    hp = hidden if H == Hp else jnp.pad(hidden, ((0, 0), (0, Hp - H)))

    if tile_b is None:
        # Single block at small B; 256-row tiles at scale (multiple of 8/16,
        # fills MXU rows, amortizes the ~0.35 us per-grid-step overhead).
        tile_b = B if B <= 256 else 256
    grid = (pl.cdiv(B, tile_b),)

    def row(n):      # batch-tiled activations / outputs (lane-dense: n % 128 == 0)
        return pl.BlockSpec((tile_b, n), lambda i: (i, 0))

    def rep(a):      # resident weights/biases: constant block index -> single-buffer
        return pl.BlockSpec(a.shape, lambda i: (0, 0), pipeline_mode=pl.Buffered(1))

    args = (xp, hp) + tuple(prep[k] for k in _WEIGHT_ORDER)
    in_specs = [row(Dp), row(Hp)] + [rep(prep[k]) for k in _WEIGHT_ORDER]

    # Explicit VMEM budget: single-buffered resident weights + double-buffered
    # activation/output tiles + headroom (default scoped limit is only 16/32 MiB).
    w_bytes = sum(int(prep[k].size) * prep[k].dtype.itemsize for k in _WEIGHT_ORDER)
    act_bytes = 2 * 2 * tile_b * (Dp + Hp) * 4          # in + out, double-buffered, f32
    vmem_limit = int(min(max(w_bytes + act_bytes + (8 << 20), 32 << 20), 128 << 20))
    # TODO(synk): on v7x (64 MiB VMEM/TC) very large H also needs an "arbitrary"
    # contraction grid axis over H with an f32 accumulator; and if multiple
    # timesteps are available, move the decode loop in-kernel to amortize weight DMA.

    y_p, h_p = pl.pallas_call(
        _gru_regressor_kernel,
        grid=grid,
        out_shape=(
            jax.ShapeDtypeStruct((B, Dp), jnp.float32),
            jax.ShapeDtypeStruct((B, Hp), jnp.float32),
        ),
        in_specs=in_specs,
        out_specs=(row(Dp), row(Hp)),
        input_output_aliases={1: 1},          # hidden state updated in place
        compiler_params=pltpu.CompilerParams(
            dimension_semantics=("parallel",),
            vmem_limit_bytes=vmem_limit),
    )(*args)

    y = y_p if D == Dp else y_p[:, :D]
    h_new = h_p if H == Hp else h_p[:, :H]
    return y, h_new


def init_params(key, input_dim, hid_dim):
    """Deterministic synthetic parameters with PyTorch-like shapes/scales."""
    H = 2 * hid_dim
    ks = jax.random.split(key, 8)
    s_gru = 1.0 / jnp.sqrt(H)
    s_fc1 = 1.0 / jnp.sqrt(H)
    s_fc2 = 1.0 / jnp.sqrt(hid_dim)
    u = lambda k, shape, s: jax.random.uniform(k, shape, jnp.float32, -s, s)
    return {
        "w_ih": u(ks[0], (3 * H, input_dim), s_gru),     # weight_ih_l0
        "w_hh": u(ks[1], (3 * H, H), s_gru),             # weight_hh_l0
        "b_ih": u(ks[2], (3 * H,), s_gru),
        "b_hh": u(ks[3], (3 * H,), s_gru),
        "fc1_w": u(ks[4], (hid_dim, H), s_fc1),          # nn.Linear(H, hid_dim)
        "fc1_b": u(ks[5], (hid_dim,), s_fc1),
        "fc2_w": u(ks[6], (input_dim, hid_dim), s_fc2),  # nn.Linear(hid_dim, D)
        "fc2_b": u(ks[7], (input_dim,), s_fc2),
    }


def _reference(x, h, p):
    """Pure-JAX reference of the PyTorch forward (unfused, unfolded, unpadded)."""
    H = h.shape[1]
    gi = x @ p["w_ih"].T + p["b_ih"]
    gh = h @ p["w_hh"].T + p["b_hh"]
    r = jax.nn.sigmoid(gi[:, :H] + gh[:, :H])
    z = jax.nn.sigmoid(gi[:, H:2 * H] + gh[:, H:2 * H])
    n = jnp.tanh(gi[:, 2 * H:] + r * gh[:, 2 * H:])
    h_new = (1.0 - z) * n + z * h
    y = h_new @ p["fc1_w"].T + p["fc1_b"]
    y = y @ p["fc2_w"].T + p["fc2_b"]
    return y, h_new


if __name__ == "__main__":
    B, input_dim, hid_dim = 8, 16, 32      # GRU hidden size H = 2*hid_dim = 64
    key = jax.random.PRNGKey(0)
    kx, kh, kp = jax.random.split(key, 3)

    x = jax.random.normal(kx, (B, input_dim), jnp.float32)
    hidden = jax.random.normal(kh, (B, 2 * hid_dim), jnp.float32)
    raw = init_params(kp, input_dim, hid_dim)

    # Reference computed BEFORE the kernel calls: the hidden buffers passed to the
    # jitted step are donated (in-place hidden update), so copy them up front.
    y_ref, h_ref = _reference(x, hidden, raw)
    hidden_a = jnp.copy(hidden)
    hidden_b = jnp.copy(hidden)

    step = jax.jit(output_regressor, donate_argnums=1)

    # Exact path: f32 weights, tight tolerance.
    prep_f32 = prepare_params(raw, weight_dtype=jnp.float32)
    y, h_new = step(x, hidden_a, prep_f32)
    jax.block_until_ready((y, h_new))
    assert jnp.allclose(y, y_ref, atol=1e-4, rtol=1e-4), float(jnp.max(jnp.abs(y - y_ref)))
    assert jnp.allclose(h_new, h_ref, atol=1e-4, rtol=1e-4)

    # Production path: bf16 weights (halves weight DMA + resident VMEM); gate math
    # stays f32, so only bf16 weight rounding shows up -> looser tolerance.
    prep_bf16 = prepare_params(raw)        # default weight_dtype=jnp.bfloat16
    y16, h16 = step(x, hidden_b, prep_bf16)
    jax.block_until_ready((y16, h16))
    assert jnp.allclose(y16, y_ref, atol=3e-2, rtol=3e-2), float(jnp.max(jnp.abs(y16 - y_ref)))
    assert jnp.allclose(h16, h_ref, atol=3e-2, rtol=3e-2)

    print("KERNEL_OK")
</pallas_src>

<mosaic_0001>
module attributes {stable_mosaic.version = 11 : i64} {
  func.func @_gru_regressor_kernel(%arg0: i32, %arg1: memref<8x128xf32, #tpu.memory_space<vmem>>, %arg2: memref<8x128xf32, #tpu.memory_space<vmem>>, %arg3: memref<128x384xf32, #tpu.memory_space<vmem>>, %arg4: memref<128x256xf32, #tpu.memory_space<vmem>>, %arg5: memref<128x128xf32, #tpu.memory_space<vmem>>, %arg6: memref<1x384xf32, #tpu.memory_space<vmem>>, %arg7: memref<1x128xf32, #tpu.memory_space<vmem>>, %arg8: memref<128x128xf32, #tpu.memory_space<vmem>>, %arg9: memref<1x128xf32, #tpu.memory_space<vmem>>, %arg10: memref<8x128xf32, #tpu.memory_space<vmem>>, %arg11: memref<8x128xf32, #tpu.memory_space<vmem>>) attributes {dimension_semantics = [#tpu.dimension_semantics<parallel>], iteration_bounds = array<i64: 1>, scalar_prefetch = 0 : i64, scratch_operands = 0 : i64, tpu.core_type = #tpu.core_type<tc>, window_params = [{transform_indices = @transform_0, window_bounds = array<i64: 8, 128>}, {transform_indices = @transform_1, window_bounds = array<i64: 8, 128>}, {pipeline_mode = #tpu.pipeline_mode<synchronous>, transform_indices = @transform_2, window_bounds = array<i64: 128, 384>}, {pipeline_mode = #tpu.pipeline_mode<synchronous>, transform_indices = @transform_3, window_bounds = array<i64: 128, 256>}, {pipeline_mode = #tpu.pipeline_mode<synchronous>, transform_indices = @transform_4, window_bounds = array<i64: 128, 128>}, {pipeline_mode = #tpu.pipeline_mode<synchronous>, transform_indices = @transform_5, window_bounds = array<i64: 1, 384>}, {pipeline_mode = #tpu.pipeline_mode<synchronous>, transform_indices = @transform_6, window_bounds = array<i64: 1, 128>}, {pipeline_mode = #tpu.pipeline_mode<synchronous>, transform_indices = @transform_7, window_bounds = array<i64: 128, 128>}, {pipeline_mode = #tpu.pipeline_mode<synchronous>, transform_indices = @transform_8, window_bounds = array<i64: 1, 128>}, {transform_indices = @transform_9, window_bounds = array<i64: 8, 128>}, {transform_indices = @transform_10, window_bounds = array<i64: 8, 128>}]} {
    %c0 = arith.constant 0 : index
    %c0_0 = arith.constant 0 : index
    %0 = vector.load %arg2[%c0, %c0_0] : memref<8x128xf32, #tpu.memory_space<vmem>>, vector<8x128xf32>
    %c0_1 = arith.constant 0 : index
    %c0_2 = arith.constant 0 : index
    %1 = vector.load %arg1[%c0_1, %c0_2] : memref<8x128xf32, #tpu.memory_space<vmem>>, vector<8x128xf32>
    %c0_3 = arith.constant 0 : index
    %c0_4 = arith.constant 0 : index
    %2 = vector.load %arg2[%c0_3, %c0_4] : memref<8x128xf32, #tpu.memory_space<vmem>>, vector<8x128xf32>
    %c0_5 = arith.constant 0 : index
    %c0_6 = arith.constant 0 : index
    %3 = vector.load %arg3[%c0_5, %c0_6] : memref<128x384xf32, #tpu.memory_space<vmem>>, vector<128x384xf32>
    %cst = arith.constant dense<0.000000e+00> : vector<8x384xf32>
    %4 = tpu.matmul %1, %3, %cst {dimension_numbers = #tpu.dot_dimension_numbers<[1], [0], [0], [1], [0, 0, 1, 1], [], []>} : vector<8x128xf32>, vector<128x384xf32>, vector<8x384xf32> -> vector<8x384xf32>
    %c0_7 = arith.constant 0 : index
    %c0_8 = arith.constant 0 : index
    %5 = vector.load %arg6[%c0_7, %c0_8] : memref<1x384xf32, #tpu.memory_space<vmem>>, vector<1x384xf32>
    %6 = vector.broadcast %5 : vector<1x384xf32> to vector<8x384xf32>
    %7 = arith.addf %4, %6 : vector<8x384xf32>
    %c0_9 = arith.constant 0 : index
    %c0_10 = arith.constant 0 : index
    %8 = vector.load %arg4[%c0_9, %c0_10] : memref<128x256xf32, #tpu.memory_space<vmem>>, vector<128x256xf32>
    %cst_11 = arith.constant dense<0.000000e+00> : vector<8x256xf32>
    %9 = tpu.matmul %2, %8, %cst_11 {dimension_numbers = #tpu.dot_dimension_numbers<[1], [0], [0], [1], [0, 0, 1, 1], [], []>} : vector<8x128xf32>, vector<128x256xf32>, vector<8x256xf32> -> vector<8x256xf32>
    %c0_12 = arith.constant 0 : index
    %c0_13 = arith.constant 0 : index
    %10 = vector.load %arg5[%c0_12, %c0_13] : memref<128x128xf32, #tpu.memory_space<vmem>>, vector<128x128xf32>
    %cst_14 = arith.constant dense<0.000000e+00> : vector<8x128xf32>
    %11 = tpu.matmul %2, %10, %cst_14 {dimension_numbers = #tpu.dot_dimension_numbers<[1], [0], [0], [1], [0, 0, 1, 1], [], []>} : vector<8x128xf32>, vector<128x128xf32>, vector<8x128xf32> -> vector<8x128xf32>
    %c0_15 = arith.constant 0 : index
    %c0_16 = arith.constant 0 : index
    %12 = vector.load %arg7[%c0_15, %c0_16] : memref<1x128xf32, #tpu.memory_space<vmem>>, vector<1x128xf32>
    %13 = vector.broadcast %12 : vector<1x128xf32> to vector<8x128xf32>
    %14 = arith.addf %11, %13 : vector<8x128xf32>
    %15 = vector.extract_strided_slice %7 {offsets = [0, 0], sizes = [8, 128], strides = [1, 1]} : vector<8x384xf32> to vector<8x128xf32>
    %16 = vector.extract_strided_slice %9 {offsets = [0, 0], sizes = [8, 128], strides = [1, 1]} : vector<8x256xf32> to vector<8x128xf32>
    %17 = arith.addf %15, %16 : vector<8x128xf32>
    %cst_17 = arith.constant 5.000000e-01 : f32
    %18 = vector.broadcast %cst_17 : f32 to vector<8x128xf32>
    %19 = arith.mulf %18, %17 : vector<8x128xf32>
    %20 = math.tanh %19 : vector<8x128xf32>
    %cst_18 = arith.constant 1.000000e+00 : f32
    %21 = vector.broadcast %cst_18 : f32 to vector<8x128xf32>
    %22 = arith.addf %20, %21 : vector<8x128xf32>
    %cst_19 = arith.constant 5.000000e-01 : f32
    %23 = vector.broadcast %cst_19 : f32 to vector<8x128xf32>
    %24 = arith.mulf %23, %22 : vector<8x128xf32>
    %25 = vector.extract_strided_slice %7 {offsets = [0, 128], sizes = [8, 128], strides = [1, 1]} : vector<8x384xf32> to vector<8x128xf32>
    %26 = vector.extract_strided_slice %9 {offsets = [0, 128], sizes = [8, 128], strides = [1, 1]} : vector<8x256xf32> to vector<8x128xf32>
    %27 = arith.addf %25, %26 : vector<8x128xf32>
    %cst_20 = arith.constant 5.000000e-01 : f32
    %28 = vector.broadcast %cst_20 : f32 to vector<8x128xf32>
    %29 = arith.mulf %28, %27 : vector<8x128xf32>
    %30 = math.tanh %29 : vector<8x128xf32>
    %cst_21 = arith.constant 1.000000e+00 : f32
    %31 = vector.broadcast %cst_21 : f32 to vector<8x128xf32>
    %32 = arith.addf %30, %31 : vector<8x128xf32>
    %cst_22 = arith.constant 5.000000e-01 : f32
    %33 = vector.broadcast %cst_22 : f32 to vector<8x128xf32>
    %34 = arith.mulf %33, %32 : vector<8x128xf32>
    %35 = vector.extract_strided_slice %7 {offsets = [0, 256], sizes = [8, 128], strides = [1, 1]} : vector<8x384xf32> to vector<8x128xf32>
    %36 = arith.mulf %24, %14 : vector<8x128xf32>
    %37 = arith.addf %35, %36 : vector<8x128xf32>
    %38 = math.tanh %37 : vector<8x128xf32>
    %39 = arith.subf %0, %38 : vector<8x128xf32>
    %40 = arith.mulf %34, %39 : vector<8x128xf32>
    %41 = arith.addf %38, %40 : vector<8x128xf32>
    %c0_23 = arith.constant 0 : index
    %c0_24 = arith.constant 0 : index
    %42 = vector.load %arg8[%c0_23, %c0_24] : memref<128x128xf32, #tpu.memory_space<vmem>>, vector<128x128xf32>
    %cst_25 = arith.constant dense<0.000000e+00> : vector<8x128xf32>
    %43 = tpu.matmul %41, %42, %cst_25 {dimension_numbers = #tpu.dot_dimension_numbers<[1], [0], [0], [1], [0, 0, 1, 1], [], []>} : vector<8x128xf32>, vector<128x128xf32>, vector<8x128xf32> -> vector<8x128xf32>
    %c0_26 = arith.constant 0 : index
    %c0_27 = arith.constant 0 : index
    %44 = vector.load %arg9[%c0_26, %c0_27] : memref<1x128xf32, #tpu.memory_space<vmem>>, vector<1x128xf32>
    %45 = vector.broadcast %44 : vector<1x128xf32> to vector<8x128xf32>
    %46 = arith.addf %43, %45 : vector<8x128xf32>
    %c0_28 = arith.constant 0 : index
    %c0_29 = arith.constant 0 : index
    %47 = vector.load %arg10[%c0_28, %c0_29] : memref<8x128xf32, #tpu.memory_space<vmem>>, vector<8x128xf32>
    tpu.vector_store %arg10[%c0_28, %c0_29], %46 {strides = array<i32>} : memref<8x128xf32, #tpu.memory_space<vmem>>, vector<8x128xf32>,
    %c0_30 = arith.constant 0 : index
    %c0_31 = arith.constant 0 : index
    %48 = vector.load %arg11[%c0_30, %c0_31] : memref<8x128xf32, #tpu.memory_space<vmem>>, vector<8x128xf32>
    tpu.vector_store %arg11[%c0_30, %c0_31], %41 {strides = array<i32>} : memref<8x128xf32, #tpu.memory_space<vmem>>, vector<8x128xf32>,
    return
  }
  func.func @transform_0(%arg0: i32) -> (i32, i32) {
    %c0_i32 = arith.constant 0 : i32
    %c0_i32_0 = arith.constant 0 : i32
    return %arg0, %c0_i32 : i32, i32
  }
  func.func @transform_1(%arg0: i32) -> (i32, i32) {
    %c0_i32 = arith.constant 0 : i32
    %c0_i32_0 = arith.constant 0 : i32
    return %arg0, %c0_i32 : i32, i32
  }
  func.func @transform_2(%arg0: i32) -> (i32, i32) {
    %c0_i32 = arith.constant 0 : i32
    %c0_i32_0 = arith.constant 0 : i32
    %c0_i32_1 = arith.constant 0 : i32
    return %c0_i32, %c0_i32_0 : i32, i32
  }
  func.func @transform_3(%arg0: i32) -> (i32, i32) {
    %c0_i32 = arith.constant 0 : i32
    %c0_i32_0 = arith.constant 0 : i32
    %c0_i32_1 = arith.constant 0 : i32
    return %c0_i32, %c0_i32_0 : i32, i32
  }
  func.func @transform_4(%arg0: i32) -> (i32, i32) {
    %c0_i32 = arith.constant 0 : i32
    %c0_i32_0 = arith.constant 0 : i32
    %c0_i32_1 = arith.constant 0 : i32
    return %c0_i32, %c0_i32_0 : i32, i32
  }
  func.func @transform_5(%arg0: i32) -> (i32, i32) {
    %c0_i32 = arith.constant 0 : i32
    %c0_i32_0 = arith.constant 0 : i32
    %c0_i32_1 = arith.constant 0 : i32
    return %c0_i32, %c0_i32_0 : i32, i32
  }
  func.func @transform_6(%arg0: i32) -> (i32, i32) {
    %c0_i32 = arith.constant 0 : i32
    %c0_i32_0 = arith.constant 0 : i32
    %c0_i32_1 = arith.constant 0 : i32
    return %c0_i32, %c0_i32_0 : i32, i32
  }
  func.func @transform_7(%arg0: i32) -> (i32, i32) {
    %c0_i32 = arith.constant 0 : i32
    %c0_i32_0 = arith.constant 0 : i32
    %c0_i32_1 = arith.constant 0 : i32
    return %c0_i32, %c0_i32_0 : i32, i32
  }
  func.func @transform_8(%arg0: i32) -> (i32, i32) {
    %c0_i32 = arith.constant 0 : i32
    %c0_i32_0 = arith.constant 0 : i32
    %c0_i32_1 = arith.constant 0 : i32
    return %c0_i32, %c0_i32_0 : i32, i32
  }
  func.func @transform_9(%arg0: i32) -> (i32, i32) {
    %c0_i32 = arith.constant 0 : i32
    %c0_i32_0 = arith.constant 0 : i32
    return %arg0, %c0_i32 : i32, i32
  }
  func.func @transform_10(%arg0: i32) -> (i32, i32) {
    %c0_i32 = arith.constant 0 : i32
    %c0_i32_0 = arith.constant 0 : i32
    return %arg0, %c0_i32 : i32, i32
  }
}

</mosaic_0001>

<llo_original>
// kernel: output_regressor.1
$region0: #{output_regressor.1}
  #allocation0 [shape = 'u32[]', space=smem, size = 0x4, offset = 0x4, fixed_abs, tag = 'smem constant byte address 0x4 - core index']
  #allocation1 [shape = 'u32[144,128]{1,0:T(1,128)}', space=vmem, size = 0x12000, scoped, tag = 'internal scratch']
  %s0 = inlined_call_operand.vmem [shape: f32[8,128], index: 0, kind: input, shape index: {}]
  %s1 = inlined_call_operand.vmem [shape: f32[8,128], index: 1, kind: input, shape index: {}, may-alias: {1,10}]
  %s2 = inlined_call_operand.hbm [shape: f32[128,384], index: 2, kind: input, shape index: {}]
  %s3 = inlined_call_operand.hbm [shape: f32[128,256], index: 3, kind: input, shape index: {}]
  %s4 = inlined_call_operand.hbm [shape: f32[128,128], index: 4, kind: input, shape index: {}]
  %s5 = inlined_call_operand.vmem [shape: f32[1,384], index: 5, kind: input, shape index: {}]
  %s6 = inlined_call_operand.vmem [shape: f32[1,128], index: 6, kind: input, shape index: {}]
  %s7 = inlined_call_operand.hbm [shape: f32[128,128], index: 7, kind: input, shape index: {}]
  %s8 = inlined_call_operand.vmem [shape: f32[1,128], index: 8, kind: input, shape index: {}]
  %s9 = inlined_call_operand.hbm [shape: f32[8,128], index: 9, kind: output, shape index: {0}]
  %s10 = inlined_call_operand.vmem [shape: f32[8,128], index: 10, kind: output, shape index: {1}, may-alias: {1,10}]
  %11 = xla_tuple %s9, %s10
  %s12 = sld [smem:[#allocation0]]
  $region70: #{output_regressor.1} parent=0
    _
  %s14 = ssub.s32 1, %s12
  %s15 = scalar_select 0, %s14, %s12
  $region1: #{output_regressor.1} parent=0
    #allocation2 [shape = 'u8[196608]{0}', space=vmem, size = 0x30000, scoped, tag = 'input window, operand 2, single buffered']
    #allocation3 [shape = 's32[1]{0}', space=sflag, size = 0x4, scoped, tag = 'scoped memory for output_regressor.1']
    #allocation4 [shape = 's32[1]{0}', space=sflag, size = 0x4, scoped, tag = 'scoped memory for output_regressor.1']
    #allocation5 [shape = 'u8[131072]{0}', space=vmem, size = 0x20000, scoped, tag = 'input window, operand 3, single buffered']
    #allocation6 [shape = 's32[1]{0}', space=sflag, size = 0x4, scoped, tag = 'scoped memory for output_regressor.1']
    #allocation7 [shape = 'u8[65536]{0}', space=vmem, size = 0x10000, scoped, tag = 'input window, operand 4, single buffered']
    #allocation8 [shape = 'u8[65536]{0}', space=vmem, size = 0x10000, scoped, tag = 'input window, operand 7, single buffered']
    #allocation9 [shape = 's32[1]{0}', space=sflag, size = 0x4, scoped, tag = 'scoped memory for output_regressor.1']
    #allocation10 [shape = 'u8[4096]{0}', space=vmem, size = 0x1000, scoped, tag = 'output window, operand 0, single buffered']
    %16 = vsyncpa [#allocation3], 0
    %17 = vsyncpa [#allocation6], 0
    %18 = vsyncpa [#allocation9], 0
    %19 = vsyncpa [#allocation4], 0
    // Predicated region
    $region2: #{output_regressor.1} parent=1 // pred_check
      _
    $region3: #{output_regressor.1} parent=1 // pred_check_branch
      %21 = sbr.rel (0) target = $region5
    $region4: #{output_regressor.1} parent=1 // pred_region
      _
    $region5: #{output_regressor.1} parent=1 // pred_fallthru
      _
    // Predicated region
    $region6: #{output_regressor.1} parent=1 // pred_check
      _
    $region7: #{output_regressor.1} parent=1 // pred_check_branch
      %23 = sbr.rel (0) target = $region9
    $region8: #{output_regressor.1} parent=1 // pred_region
      _
    $region9: #{output_regressor.1} parent=1 // pred_fallthru
      _
    // Predicated region
    $region10: #{output_regressor.1} parent=1 // pred_check
      _
    $region11: #{output_regressor.1} parent=1 // pred_check_branch
      %25 = sbr.rel (0) target = $region13
    $region12: #{output_regressor.1} parent=1 // pred_region
      %s27 = ssub.s32 6144, 6144
      %28 = vsyncadd [#allocation3], %s27
      %s29 = sshll.u32 [#allocation2], 4
      %s30 = int_to_ptr.vmem [resolvable:$true] %s29
      %35 = dma.hbm_to_vmem [thread:$0]  %s2, 6144, %s30, [#allocation3], 384, 384, 24
    $region13: #{output_regressor.1} parent=1 // pred_fallthru
      _
    // Predicated region
    $region14: #{output_regressor.1} parent=1 // pred_check
      _
    $region15: #{output_regressor.1} parent=1 // pred_check_branch
      %37 = sbr.rel (0) target = $region17
    $region16: #{output_regressor.1} parent=1 // pred_region
      %s39 = ssub.s32 4096, 4096
      %40 = vsyncadd [#allocation6], %s39
      %s41 = sshll.u32 [#allocation5], 4
      %s42 = int_to_ptr.vmem [resolvable:$true] %s41
      %47 = dma.hbm_to_vmem [thread:$0]  %s3, 4096, %s42, [#allocation6], 256, 256, 16
    $region17: #{output_regressor.1} parent=1 // pred_fallthru
      _
    // Predicated region
    $region18: #{output_regressor.1} parent=1 // pred_check
      _
    $region19: #{output_regressor.1} parent=1 // pred_check_branch
      %49 = sbr.rel (0) target = $region21
    $region20: #{output_regressor.1} parent=1 // pred_region
      %s51 = ssub.s32 2048, 2048
      %52 = vsyncadd [#allocation6], %s51
      %s53 = sshll.u32 [#allocation7], 4
      %s54 = int_to_ptr.vmem [resolvable:$true] %s53
      %59 = dma.hbm_to_vmem [thread:$0]  %s4, 2048, %s54, [#allocation6], 128, 128, 8
    $region21: #{output_regressor.1} parent=1 // pred_fallthru
      _
    // Predicated region
    $region22: #{output_regressor.1} parent=1 // pred_check
      _
    $region23: #{output_regressor.1} parent=1 // pred_check_branch
      %61 = sbr.rel (0) target = $region25
    $region24: #{output_regressor.1} parent=1 // pred_region
      _
    $region25: #{output_regressor.1} parent=1 // pred_fallthru
      _
    // Predicated region
    $region26: #{output_regressor.1} parent=1 // pred_check
      _
    $region27: #{output_regressor.1} parent=1 // pred_check_branch
      %63 = sbr.rel (0) target = $region29
    $region28: #{output_regressor.1} parent=1 // pred_region
      _
    $region29: #{output_regressor.1} parent=1 // pred_fallthru
      _
    // Predicated region
    $region30: #{output_regressor.1} parent=1 // pred_check
      _
    $region31: #{output_regressor.1} parent=1 // pred_check_branch
      %65 = sbr.rel (0) target = $region33
    $region32: #{output_regressor.1} parent=1 // pred_region
      %s67 = ssub.s32 2048, 2048
      %68 = vsyncadd [#allocation9], %s67
      %s69 = sshll.u32 [#allocation8], 4
      %s70 = int_to_ptr.vmem [resolvable:$true] %s69
      %75 = dma.hbm_to_vmem [thread:$0]  %s7, 2048, %s70, [#allocation9], 128, 128, 8
    $region33: #{output_regressor.1} parent=1 // pred_fallthru
      _
    // Predicated region
    $region34: #{output_regressor.1} parent=1 // pred_check
      _
    $region35: #{output_regressor.1} parent=1 // pred_check_branch
      %77 = sbr.rel (0) target = $region37
    $region36: #{output_regressor.1} parent=1 // pred_region
      _
    $region37: #{output_regressor.1} parent=1 // pred_fallthru
      _
    // Predicated region
    $region38: #{output_regressor.1} parent=1 // pred_check
      _
    $region39: #{output_regressor.1} parent=1 // pred_check_branch
      %79 = sbr.rel (0) target = $region41
    $region40: #{output_regressor.1} parent=1 // pred_region
      %80 = dma.done [#allocation3], 6144
    $region41: #{output_regressor.1} parent=1 // pred_fallthru
      _
    // Predicated region
    $region42: #{output_regressor.1} parent=1 // pred_check
      _
    $region43: #{output_regressor.1} parent=1 // pred_check_branch
      %82 = sbr.rel (0) target = $region45
    $region44: #{output_regressor.1} parent=1 // pred_region
      %83 = dma.done [#allocation6], 4096
    $region45: #{output_regressor.1} parent=1 // pred_fallthru
      _
    // Predicated region
    $region46: #{output_regressor.1} parent=1 // pred_check
      _
    $region47: #{output_regressor.1} parent=1 // pred_check_branch
      %85 = sbr.rel (0) target = $region49
    $region48: #{output_regressor.1} parent=1 // pred_region
      %86 = dma.done [#allocation6], 2048
    $region49: #{output_regressor.1} parent=1 // pred_fallthru
      _
    // Predicated region
    $region50: #{output_regressor.1} parent=1 // pred_check
      _
    $region51: #{output_regressor.1} parent=1 // pred_check_branch
      %88 = sbr.rel (0) target = $region53
    $region52: #{output_regressor.1} parent=1 // pred_region
      %89 = dma.done [#allocation9], 2048
    $region53: #{output_regressor.1} parent=1 // pred_fallthru
      _
    %v90 = vld [vmem:[%s1] sm:$0xff]
    %v91 = vld [vmem:[%s0] sm:$0xff]
    %v92 = vld [vmem:[#allocation2] sm:$0xff]
    %v93 = vld [vmem:[#allocation2 + $0x8] sm:$0xff]
    %v94 = vld [vmem:[#allocation2 + $0x10] sm:$0xff]
    %v95 = vld [vmem:[#allocation2 + $0x18] sm:$0xff]
    %v96 = vld [vmem:[#allocation2 + $0x20] sm:$0xff]
    %v97 = vld [vmem:[#allocation2 + $0x28] sm:$0xff]
    %v98 = vld [vmem:[#allocation2 + $0x30] sm:$0xff]
    %v99 = vld [vmem:[#allocation2 + $0x38] sm:$0xff]
    %v100 = vld [vmem:[#allocation2 + $0x40] sm:$0xff]
    %v101 = vld [vmem:[#allocation2 + $0x48] sm:$0xff]
    %v102 = vld [vmem:[#allocation2 + $0x50] sm:$0xff]
    %v103 = vld [vmem:[#allocation2 + $0x58] sm:$0xff]
    %v104 = vld [vmem:[#allocation2 + $0x60] sm:$0xff]
    %v105 = vld [vmem:[#allocation2 + $0x68] sm:$0xff]
    %v106 = vld [vmem:[#allocation2 + $0x70] sm:$0xff]
    %v107 = vld [vmem:[#allocation2 + $0x78] sm:$0xff]
    %v108 = vld [vmem:[#allocation2 + $0x80] sm:$0xff]
    %v109 = vld [vmem:[#allocation2 + $0x88] sm:$0xff]
    %v110 = vld [vmem:[#allocation2 + $0x90] sm:$0xff]
    %v111 = vld [vmem:[#allocation2 + $0x98] sm:$0xff]
    %v112 = vld [vmem:[#allocation2 + $0xa0] sm:$0xff]
    %v113 = vld [vmem:[#allocation2 + $0xa8] sm:$0xff]
    %v114 = vld [vmem:[#allocation2 + $0xb0] sm:$0xff]
    %v115 = vld [vmem:[#allocation2 + $0xb8] sm:$0xff]
    %v116 = vld [vmem:[#allocation2 + $0xc0] sm:$0xff]
    %v117 = vld [vmem:[#allocation2 + $0xc8] sm:$0xff]
    %v118 = vld [vmem:[#allocation2 + $0xd0] sm:$0xff]
    %v119 = vld [vmem:[#allocation2 + $0xd8] sm:$0xff]
    %v120 = vld [vmem:[#allocation2 + $0xe0] sm:$0xff]
    %v121 = vld [vmem:[#allocation2 + $0xe8] sm:$0xff]
    %v122 = vld [vmem:[#allocation2 + $0xf0] sm:$0xff]
    %v123 = vld [vmem:[#allocation2 + $0xf8] sm:$0xff]
    %v124 = vld [vmem:[#allocation2 + $0x100] sm:$0xff]
    %v125 = vld [vmem:[#allocation2 + $0x108] sm:$0xff]
    %v126 = vld [vmem:[#allocation2 + $0x110] sm:$0xff]
    %v127 = vld [vmem:[#allocation2 + $0x118] sm:$0xff]
    %v128 = vld [vmem:[#allocation2 + $0x120] sm:$0xff]
    %v129 = vld [vmem:[#allocation2 + $0x128] sm:$0xff]
    %v130 = vld [vmem:[#allocation2 + $0x130] sm:$0xff]
    %v131 = vld [vmem:[#allocation2 + $0x138] sm:$0xff]
    %v132 = vld [vmem:[#allocation2 + $0x140] sm:$0xff]
    %v133 = vld [vmem:[#allocation2 + $0x148] sm:$0xff]
    %v134 = vld [vmem:[#allocation2 + $0x150] sm:$0xff]
    %v135 = vld [vmem:[#allocation2 + $0x158] sm:$0xff]
    %v136 = vld [vmem:[#allocation2 + $0x160] sm:$0xff]
    %v137 = vld [vmem:[#allocation2 + $0x168] sm:$0xff]
    %v138 = vld [vmem:[#allocation2 + $0x170] sm:$0xff]
    %v139 = vld [vmem:[#allocation2 + $0x178] sm:$0xff]
    %v140 = vld [vmem:[%s5] sm:$0x7]
    %v142 = vlaneseq
    %v143 = vshrl.u32 %v142, 7
    %v144 = vsub.s32 0, %v143
    %v145 = vrot.slane %v140, %v144
    %v146 = vlaneseq
    %v147 = vshrl.u32 %v146, 7
    %v148 = vsub.s32 1, %v147
    %v149 = vrot.slane %v140, %v148
    %v150 = vlaneseq
    %v151 = vshrl.u32 %v150, 7
    %v152 = vsub.s32 2, %v151
    %v153 = vrot.slane %v140, %v152
    %157 = vmatprep.subr.mxu0 %v138
    %158 = vmatpush1.msra.mxu0 %v137
    %159 = vmatprep.subr.mxu0 %v135
    %160 = vmatpush1.msra.mxu0 %v134
    %161 = vmatprep.subr.mxu0 %v132
    %162 = vmatpush1.msra.mxu0 %v131
    %163 = vmatprep.subr.mxu0 %v129
    %164 = vmatpush1.msra.mxu0 %v128
    %165 = vmatprep.subr.mxu0 %v126
    %166 = vmatpush1.msra.mxu0 %v125
    %167 = vmatprep.subr.mxu0 %v123
    %168 = vmatpush1.msra.mxu0 %v122
    %169 = vmatprep.subr.mxu0 %v120
    %170 = vmatpush1.msra.mxu0 %v119
    %171 = vmatprep.subr.mxu0 %v117
    %172 = vmatpush1.msra.mxu0 %v116
    %173 = vmatprep.subr.mxu0 %v114
    %174 = vmatpush1.msra.mxu0 %v113
    %175 = vmatprep.subr.mxu0 %v111
    %176 = vmatpush1.msra.mxu0 %v110
    %177 = vmatprep.subr.mxu0 %v108
    %178 = vmatpush1.msra.mxu0 %v107
    %179 = vmatprep.subr.mxu0 %v105
    %180 = vmatpush1.msra.mxu0 %v104
    %181 = vmatprep.subr.mxu0 %v102
    %182 = vmatpush1.msra.mxu0 %v101
    %183 = vmatprep.subr.mxu0 %v99
    %184 = vmatpush1.msra.mxu0 %v98
    %185 = vmatprep.subr.mxu0 %v96
    %186 = vmatpush1.msra.mxu0 %v95
    %187 = vmatprep.subr.mxu0 %v93
    %188 = vmatpush1.msra.mxu0 %v92
    %189 = vmatprep.subr.mxu0 0.0
    %190 = vmatpush2.msra.mxu0 0.0
    %191 = vmatprep.subr.mxu0 0.0
    %192 = vmatpush2.msra.mxu0 0.0
    %193 = vmatprep.subr.mxu0 0.0
    %194 = vmatpush2.msra.mxu0 0.0
    %195 = vmatprep.subr.mxu0 0.0
    %196 = vmatpush2.msra.mxu0 0.0
    %197 = vmatprep.subr.mxu0 0.0
    %198 = vmatpush2.msra.mxu0 0.0
    %199 = vmatprep.subr.mxu0 0.0
    %200 = vmatpush2.msra.mxu0 0.0
    %201 = vmatprep.subr.mxu0 0.0
    %202 = vmatpush2.msra.mxu0 0.0
    %203 = vmatprep.subr.mxu0 0.0
    %204 = vmatpush2.msra.mxu0 0.0
    %205 = vmatprep.subr.mxu0 0.0
    %206 = vmatpush2.msra.mxu0 0.0
    %207 = vmatprep.subr.mxu0 0.0
    %208 = vmatpush2.msra.mxu0 0.0
    %209 = vmatprep.subr.mxu0 0.0
    %210 = vmatpush2.msra.mxu0 0.0
    %211 = vmatprep.subr.mxu0 0.0
    %212 = vmatpush2.msra.mxu0 0.0
    %213 = vmatprep.subr.mxu0 0.0
    %214 = vmatpush2.msra.mxu0 0.0
    %215 = vmatprep.subr.mxu0 0.0
    %216 = vmatpush2.msra.mxu0 0.0
    %217 = vmatprep.subr.mxu0 0.0
    %218 = vmatpush2.msra.mxu0 0.0
    %219 = vmatprep.subr.mxu0 0.0
    %220 = vmatpush2.msra.mxu0 0.0
    %221 = vmatprep.mubr.f32.mxu0 0.0
    %222 = vmatmul.mubr.f32.gmra.mxu0 %v91
    %v223 = vpop.f32.mrf.mxu0
    %v224 = vadd.f32 %v145, %v223
    %v225 = vpop.f32.mrf.mxu0
    %v226 = vadd.f32 %v149, %v225
    %227 = vdwg.mxu0
    %228 = vmatprep.subr.mxu0 0.0
    %229 = vmatpush1.msra.mxu0 %v139
    %230 = vmatprep.subr.mxu0 0.0
    %231 = vmatpush1.msra.mxu0 %v136
    %232 = vmatprep.subr.mxu0 0.0
    %233 = vmatpush1.msra.mxu0 %v133
    %234 = vmatprep.subr.mxu0 0.0
    %235 = vmatpush1.msra.mxu0 %v130
    %236 = vmatprep.subr.mxu0 0.0
    %237 = vmatpush1.msra.mxu0 %v127
    %238 = vmatprep.subr.mxu0 0.0
    %239 = vmatpush1.msra.mxu0 %v124
    %240 = vmatprep.subr.mxu0 0.0
    %241 = vmatpush1.msra.mxu0 %v121
    %242 = vmatprep.subr.mxu0 0.0
    %243 = vmatpush1.msra.mxu0 %v118
    %244 = vmatprep.subr.mxu0 0.0
    %245 = vmatpush1.msra.mxu0 %v115
    %246 = vmatprep.subr.mxu0 0.0
    %247 = vmatpush1.msra.mxu0 %v112
    %248 = vmatprep.subr.mxu0 0.0
    %249 = vmatpush1.msra.mxu0 %v109
    %250 = vmatprep.subr.mxu0 0.0
    %251 = vmatpush1.msra.mxu0 %v106
    %252 = vmatprep.subr.mxu0 0.0
    %253 = vmatpush1.msra.mxu0 %v103
    %254 = vmatprep.subr.mxu0 0.0
    %255 = vmatpush1.msra.mxu0 %v100
    %256 = vmatprep.subr.mxu0 0.0
    %257 = vmatpush1.msra.mxu0 %v97
    %258 = vmatprep.subr.mxu0 0.0
    %259 = vmatpush1.msra.mxu0 %v94
    %260 = vmatprep.subr.mxu0 0.0
    %261 = vmatpush2.msra.mxu0 0.0
    %262 = vmatprep.subr.mxu0 0.0
    %263 = vmatpush2.msra.mxu0 0.0
    %264 = vmatprep.subr.mxu0 0.0
    %265 = vmatpush2.msra.mxu0 0.0
    %266 = vmatprep.subr.mxu0 0.0
    %267 = vmatpush2.msra.mxu0 0.0
    %268 = vmatprep.subr.mxu0 0.0
    %269 = vmatpush2.msra.mxu0 0.0
    %270 = vmatprep.subr.mxu0 0.0
    %271 = vmatpush2.msra.mxu0 0.0
    %272 = vmatprep.subr.mxu0 0.0
    %273 = vmatpush2.msra.mxu0 0.0
    %274 = vmatprep.subr.mxu0 0.0
    %275 = vmatpush2.msra.mxu0 0.0
    %276 = vmatprep.subr.mxu0 0.0
    %277 = vmatpush2.msra.mxu0 0.0
    %278 = vmatprep.subr.mxu0 0.0
    %279 = vmatpush2.msra.mxu0 0.0
    %280 = vmatprep.subr.mxu0 0.0
    %281 = vmatpush2.msra.mxu0 0.0
    %282 = vmatprep.subr.mxu0 0.0
    %283 = vmatpush2.msra.mxu0 0.0
    %284 = vmatprep.subr.mxu0 0.0
    %285 = vmatpush2.msra.mxu0 0.0
    %286 = vmatprep.subr.mxu0 0.0
    %287 = vmatpush2.msra.mxu0 0.0
    %288 = vmatprep.subr.mxu0 0.0
    %289 = vmatpush2.msra.mxu0 0.0
    %290 = vmatprep.subr.mxu0 0.0
    %291 = vmatpush2.msra.mxu0 0.0
    %292 = vmatprep.mubr.f32.mxu0 0.0
    %293 = vmatmul.mubr.f32.gmra.mxu0 %v91
    %v294 = vpop.f32.mrf.mxu0
    %v295 = vadd.f32 %v153, %v294
    %v296 = vpop.f32.mrf.mxu0
    %297 = vdwg.mxu0
    %v298 = vld [vmem:[#allocation5] sm:$0xff]
    %v299 = vld [vmem:[#allocation5 + $0x8] sm:$0xff]
    %v300 = vld [vmem:[#allocation5 + $0x10] sm:$0xff]
    %v301 = vld [vmem:[#allocation5 + $0x18] sm:$0xff]
    %v302 = vld [vmem:[#allocation5 + $0x20] sm:$0xff]
    %v303 = vld [vmem:[#allocation5 + $0x28] sm:$0xff]
    %v304 = vld [vmem:[#allocation5 + $0x30] sm:$0xff]
    %v305 = vld [vmem:[#allocation5 + $0x38] sm:$0xff]
    %v306 = vld [vmem:[#allocation5 + $0x40] sm:$0xff]
    %v307 = vld [vmem:[#allocation5 + $0x48] sm:$0xff]
    %v308 = vld [vmem:[#allocation5 + $0x50] sm:$0xff]
    %v309 = vld [vmem:[#allocation5 + $0x58] sm:$0xff]
    %v310 = vld [vmem:[#allocation5 + $0x60] sm:$0xff]
    %v311 = vld [vmem:[#allocation5 + $0x68] sm:$0xff]
    %v312 = vld [vmem:[#allocation5 + $0x70] sm:$0xff]
    %v313 = vld [vmem:[#allocation5 + $0x78] sm:$0xff]
    %v314 = vld [vmem:[#allocation5 + $0x80] sm:$0xff]
    %v315 = vld [vmem:[#allocation5 + $0x88] sm:$0xff]
    %v316 = vld [vmem:[#allocation5 + $0x90] sm:$0xff]
    %v317 = vld [vmem:[#allocation5 + $0x98] sm:$0xff]
    %v318 = vld [vmem:[#allocation5 + $0xa0] sm:$0xff]
    %v319 = vld [vmem:[#allocation5 + $0xa8] sm:$0xff]
    %v320 = vld [vmem:[#allocation5 + $0xb0] sm:$0xff]
    %v321 = vld [vmem:[#allocation5 + $0xb8] sm:$0xff]
    %v322 = vld [vmem:[#allocation5 + $0xc0] sm:$0xff]
    %v323 = vld [vmem:[#allocation5 + $0xc8] sm:$0xff]
    %v324 = vld [vmem:[#allocation5 + $0xd0] sm:$0xff]
    %v325 = vld [vmem:[#allocation5 + $0xd8] sm:$0xff]
    %v326 = vld [vmem:[#allocation5 + $0xe0] sm:$0xff]
    %v327 = vld [vmem:[#allocation5 + $0xe8] sm:$0xff]
    %v328 = vld [vmem:[#allocation5 + $0xf0] sm:$0xff]
    %v329 = vld [vmem:[#allocation5 + $0xf8] sm:$0xff]
    %330 = vmatprep.subr.mxu0 %v329
    %331 = vmatpush1.msra.mxu0 %v328
    %332 = vmatprep.subr.mxu0 %v327
    %333 = vmatpush1.msra.mxu0 %v326
    %334 = vmatprep.subr.mxu0 %v325
    %335 = vmatpush1.msra.mxu0 %v324
    %336 = vmatprep.subr.mxu0 %v323
    %337 = vmatpush1.msra.mxu0 %v322
    %338 = vmatprep.subr.mxu0 %v321
    %339 = vmatpush1.msra.mxu0 %v320
    %340 = vmatprep.subr.mxu0 %v319
    %341 = vmatpush1.msra.mxu0 %v318
    %342 = vmatprep.subr.mxu0 %v317
    %343 = vmatpush1.msra.mxu0 %v316
    %344 = vmatprep.subr.mxu0 %v315
    %345 = vmatpush1.msra.mxu0 %v314
    %346 = vmatprep.subr.mxu0 %v313
    %347 = vmatpush1.msra.mxu0 %v312
    %348 = vmatprep.subr.mxu0 %v311
    %349 = vmatpush1.msra.mxu0 %v310
    %350 = vmatprep.subr.mxu0 %v309
    %351 = vmatpush1.msra.mxu0 %v308
    %352 = vmatprep.subr.mxu0 %v307
    %353 = vmatpush1.msra.mxu0 %v306
    %354 = vmatprep.subr.mxu0 %v305
    %355 = vmatpush1.msra.mxu0 %v304
    %356 = vmatprep.subr.mxu0 %v303
    %357 = vmatpush1.msra.mxu0 %v302
    %358 = vmatprep.subr.mxu0 %v301
    %359 = vmatpush1.msra.mxu0 %v300
    %360 = vmatprep.subr.mxu0 %v299
    %361 = vmatpush1.msra.mxu0 %v298
    %362 = vmatprep.subr.mxu0 0.0
    %363 = vmatpush2.msra.mxu0 0.0
    %364 = vmatprep.subr.mxu0 0.0
    %365 = vmatpush2.msra.mxu0 0.0
    %366 = vmatprep.subr.mxu0 0.0
    %367 = vmatpush2.msra.mxu0 0.0
    %368 = vmatprep.subr.mxu0 0.0
    %369 = vmatpush2.msra.mxu0 0.0
    %370 = vmatprep.subr.mxu0 0.0
    %371 = vmatpush2.msra.mxu0 0.0
    %372 = vmatprep.subr.mxu0 0.0
    %373 = vmatpush2.msra.mxu0 0.0
    %374 = vmatprep.subr.mxu0 0.0
    %375 = vmatpush2.msra.mxu0 0.0
    %376 = vmatprep.subr.mxu0 0.0
    %377 = vmatpush2.msra.mxu0 0.0
    %378 = vmatprep.subr.mxu0 0.0
    %379 = vmatpush2.msra.mxu0 0.0
    %380 = vmatprep.subr.mxu0 0.0
    %381 = vmatpush2.msra.mxu0 0.0
    %382 = vmatprep.subr.mxu0 0.0
    %383 = vmatpush2.msra.mxu0 0.0
    %384 = vmatprep.subr.mxu0 0.0
    %385 = vmatpush2.msra.mxu0 0.0
    %386 = vmatprep.subr.mxu0 0.0
    %387 = vmatpush2.msra.mxu0 0.0
    %388 = vmatprep.subr.mxu0 0.0
    %389 = vmatpush2.msra.mxu0 0.0
    %390 = vmatprep.subr.mxu0 0.0
    %391 = vmatpush2.msra.mxu0 0.0
    %392 = vmatprep.subr.mxu0 0.0
    %393 = vmatpush2.msra.mxu0 0.0
    %394 = vmatprep.mubr.f32.mxu0 0.0
    %395 = vmatmul.mubr.f32.gmra.mxu0 %v90
    %v396 = vpop.f32.mrf.mxu0
    %v397 = vadd.f32 0.0, %v396
    %v398 = vpop.f32.mrf.mxu0
    %v399 = vadd.f32 0.0, %v398
    %400 = vdwg.mxu0
    %v401 = vld [vmem:[#allocation7] sm:$0xff]
    %v402 = vld [vmem:[#allocation7 + $0x8] sm:$0xff]
    %v403 = vld [vmem:[#allocation7 + $0x10] sm:$0xff]
    %v404 = vld [vmem:[#allocation7 + $0x18] sm:$0xff]
    %v405 = vld [vmem:[#allocation7 + $0x20] sm:$0xff]
    %v406 = vld [vmem:[#allocation7 + $0x28] sm:$0xff]
    %v407 = vld [vmem:[#allocation7 + $0x30] sm:$0xff]
    %v408 = vld [vmem:[#allocation7 + $0x38] sm:$0xff]
    %v409 = vld [vmem:[#allocation7 + $0x40] sm:$0xff]
    %v410 = vld [vmem:[#allocation7 + $0x48] sm:$0xff]
    %v411 = vld [vmem:[#allocation7 + $0x50] sm:$0xff]
    %v412 = vld [vmem:[#allocation7 + $0x58] sm:$0xff]
    %v413 = vld [vmem:[#allocation7 + $0x60] sm:$0xff]
    %v414 = vld [vmem:[#allocation7 + $0x68] sm:$0xff]
    %v415 = vld [vmem:[#allocation7 + $0x70] sm:$0xff]
    %v416 = vld [vmem:[#allocation7 + $0x78] sm:$0xff]
    %v417 = vld [vmem:[%s6] sm:$0x1]
    %v419 = vlaneseq
    %v420 = vshrl.u32 %v419, 7
    %v421 = vsub.s32 0, %v420
    %v422 = vrot.slane %v417, %v421
    %424 = vmatprep.subr.mxu0 0.0
    %425 = vmatpush1.msra.mxu0 %v416
    %426 = vmatprep.subr.mxu0 0.0
    %427 = vmatpush1.msra.mxu0 %v415
    %428 = vmatprep.subr.mxu0 0.0
    %429 = vmatpush1.msra.mxu0 %v414
    %430 = vmatprep.subr.mxu0 0.0
    %431 = vmatpush1.msra.mxu0 %v413
    %432 = vmatprep.subr.mxu0 0.0
    %433 = vmatpush1.msra.mxu0 %v412
    %434 = vmatprep.subr.mxu0 0.0
    %435 = vmatpush1.msra.mxu0 %v411
    %436 = vmatprep.subr.mxu0 0.0
    %437 = vmatpush1.msra.mxu0 %v410
    %438 = vmatprep.subr.mxu0 0.0
    %439 = vmatpush1.msra.mxu0 %v409
    %440 = vmatprep.subr.mxu0 0.0
    %441 = vmatpush1.msra.mxu0 %v408
    %442 = vmatprep.subr.mxu0 0.0
    %443 = vmatpush1.msra.mxu0 %v407
    %444 = vmatprep.subr.mxu0 0.0
    %445 = vmatpush1.msra.mxu0 %v406
    %446 = vmatprep.subr.mxu0 0.0
    %447 = vmatpush1.msra.mxu0 %v405
    %448 = vmatprep.subr.mxu0 0.0
    %449 = vmatpush1.msra.mxu0 %v404
    %450 = vmatprep.subr.mxu0 0.0
    %451 = vmatpush1.msra.mxu0 %v403
    %452 = vmatprep.subr.mxu0 0.0
    %453 = vmatpush1.msra.mxu0 %v402
    %454 = vmatprep.subr.mxu0 0.0
    %455 = vmatpush1.msra.mxu0 %v401
    %456 = vmatprep.subr.mxu0 0.0
    %457 = vmatpush2.msra.mxu0 0.0
    %458 = vmatprep.subr.mxu0 0.0
    %459 = vmatpush2.msra.mxu0 0.0
    %460 = vmatprep.subr.mxu0 0.0
    %461 = vmatpush2.msra.mxu0 0.0
    %462 = vmatprep.subr.mxu0 0.0
    %463 = vmatpush2.msra.mxu0 0.0
    %464 = vmatprep.subr.mxu0 0.0
    %465 = vmatpush2.msra.mxu0 0.0
    %466 = vmatprep.subr.mxu0 0.0
    %467 = vmatpush2.msra.mxu0 0.0
    %468 = vmatprep.subr.mxu0 0.0
    %469 = vmatpush2.msra.mxu0 0.0
    %470 = vmatprep.subr.mxu0 0.0
    %471 = vmatpush2.msra.mxu0 0.0
    %472 = vmatprep.subr.mxu0 0.0
    %473 = vmatpush2.msra.mxu0 0.0
    %474 = vmatprep.subr.mxu0 0.0
    %475 = vmatpush2.msra.mxu0 0.0
    %476 = vmatprep.subr.mxu0 0.0
    %477 = vmatpush2.msra.mxu0 0.0
    %478 = vmatprep.subr.mxu0 0.0
    %479 = vmatpush2.msra.mxu0 0.0
    %480 = vmatprep.subr.mxu0 0.0
    %481 = vmatpush2.msra.mxu0 0.0
    %482 = vmatprep.subr.mxu0 0.0
    %483 = vmatpush2.msra.mxu0 0.0
    %484 = vmatprep.subr.mxu0 0.0
    %485 = vmatpush2.msra.mxu0 0.0
    %486 = vmatprep.subr.mxu0 0.0
    %487 = vmatpush2.msra.mxu0 0.0
    %488 = vmatprep.mubr.f32.mxu0 0.0
    %489 = vmatmul.mubr.f32.gmra.mxu0 %v90
    %v490 = vpop.f32.mrf.mxu0
    %v491 = vadd.f32 %v422, %v490
    %v492 = vpop.f32.mrf.mxu0
    %493 = vdwg.mxu0
    %v494 = vadd.f32 %v224, %v397
    %v495 = vmul.f32 %v494, 0.5
    %v496 = vtanh.pop %v495
    %v497 = vadd.f32 %v496, 1.0
    %v498 = vmul.f32 %v497, 0.5
    %v499 = vadd.f32 %v226, %v399
    %v500 = vmul.f32 %v499, 0.5
    %v501 = vtanh.pop %v500
    %v502 = vadd.f32 %v501, 1.0
    %v503 = vmul.f32 %v502, 0.5
    %v504 = vmul.f32 %v498, %v491
    %v505 = vadd.f32 %v295, %v504
    %v506 = vtanh.pop %v505
    %v507 = vsub.f32 %v90, %v506
    %v508 = vmul.f32 %v503, %v507
    %v509 = vadd.f32 %v506, %v508
    %v510 = vld [vmem:[#allocation8] sm:$0xff]
    %v511 = vld [vmem:[#allocation8 + $0x8] sm:$0xff]
    %v512 = vld [vmem:[#allocation8 + $0x10] sm:$0xff]
    %v513 = vld [vmem:[#allocation8 + $0x18] sm:$0xff]
    %v514 = vld [vmem:[#allocation8 + $0x20] sm:$0xff]
    %v515 = vld [vmem:[#allocation8 + $0x28] sm:$0xff]
    %v516 = vld [vmem:[#allocation8 + $0x30] sm:$0xff]
    %v517 = vld [vmem:[#allocation8 + $0x38] sm:$0xff]
    %v518 = vld [vmem:[#allocation8 + $0x40] sm:$0xff]
    %v519 = vld [vmem:[#allocation8 + $0x48] sm:$0xff]
    %v520 = vld [vmem:[#allocation8 + $0x50] sm:$0xff]
    %v521 = vld [vmem:[#allocation8 + $0x58] sm:$0xff]
    %v522 = vld [vmem:[#allocation8 + $0x60] sm:$0xff]
    %v523 = vld [vmem:[#allocation8 + $0x68] sm:$0xff]
    %v524 = vld [vmem:[#allocation8 + $0x70] sm:$0xff]
    %v525 = vld [vmem:[#allocation8 + $0x78] sm:$0xff]
    %v526 = vld [vmem:[%s8] sm:$0x1]
    %v528 = vlaneseq
    %v529 = vshrl.u32 %v528, 7
    %v530 = vsub.s32 0, %v529
    %v531 = vrot.slane %v526, %v530
    %533 = vmatprep.subr.mxu0 0.0
    %534 = vmatpush1.msra.mxu0 %v525
    %535 = vmatprep.subr.mxu0 0.0
    %536 = vmatpush1.msra.mxu0 %v524
    %537 = vmatprep.subr.mxu0 0.0
    %538 = vmatpush1.msra.mxu0 %v523
    %539 = vmatprep.subr.mxu0 0.0
    %540 = vmatpush1.msra.mxu0 %v522
    %541 = vmatprep.subr.mxu0 0.0
    %542 = vmatpush1.msra.mxu0 %v521
    %543 = vmatprep.subr.mxu0 0.0
    %544 = vmatpush1.msra.mxu0 %v520
    %545 = vmatprep.subr.mxu0 0.0
    %546 = vmatpush1.msra.mxu0 %v519
    %547 = vmatprep.subr.mxu0 0.0
    %548 = vmatpush1.msra.mxu0 %v518
    %549 = vmatprep.subr.mxu0 0.0
    %550 = vmatpush1.msra.mxu0 %v517
    %551 = vmatprep.subr.mxu0 0.0
    %552 = vmatpush1.msra.mxu0 %v516
    %553 = vmatprep.subr.mxu0 0.0
    %554 = vmatpush1.msra.mxu0 %v515
    %555 = vmatprep.subr.mxu0 0.0
    %556 = vmatpush1.msra.mxu0 %v514
    %557 = vmatprep.subr.mxu0 0.0
    %558 = vmatpush1.msra.mxu0 %v513
    %559 = vmatprep.subr.mxu0 0.0
    %560 = vmatpush1.msra.mxu0 %v512
    %561 = vmatprep.subr.mxu0 0.0
    %562 = vmatpush1.msra.mxu0 %v511
    %563 = vmatprep.subr.mxu0 0.0
    %564 = vmatpush1.msra.mxu0 %v510
    %565 = vmatprep.subr.mxu0 0.0
    %566 = vmatpush2.msra.mxu0 0.0
    %567 = vmatprep.subr.mxu0 0.0
    %568 = vmatpush2.msra.mxu0 0.0
    %569 = vmatprep.subr.mxu0 0.0
    %570 = vmatpush2.msra.mxu0 0.0
    %571 = vmatprep.subr.mxu0 0.0
    %572 = vmatpush2.msra.mxu0 0.0
    %573 = vmatprep.subr.mxu0 0.0
    %574 = vmatpush2.msra.mxu0 0.0
    %575 = vmatprep.subr.mxu0 0.0
    %576 = vmatpush2.msra.mxu0 0.0
    %577 = vmatprep.subr.mxu0 0.0
    %578 = vmatpush2.msra.mxu0 0.0
    %579 = vmatprep.subr.mxu0 0.0
    %580 = vmatpush2.msra.mxu0 0.0
    %581 = vmatprep.subr.mxu0 0.0
    %582 = vmatpush2.msra.mxu0 0.0
    %583 = vmatprep.subr.mxu0 0.0
    %584 = vmatpush2.msra.mxu0 0.0
    %585 = vmatprep.subr.mxu0 0.0
    %586 = vmatpush2.msra.mxu0 0.0
    %587 = vmatprep.subr.mxu0 0.0
    %588 = vmatpush2.msra.mxu0 0.0
    %589 = vmatprep.subr.mxu0 0.0
    %590 = vmatpush2.msra.mxu0 0.0
    %591 = vmatprep.subr.mxu0 0.0
    %592 = vmatpush2.msra.mxu0 0.0
    %593 = vmatprep.subr.mxu0 0.0
    %594 = vmatpush2.msra.mxu0 0.0
    %595 = vmatprep.subr.mxu0 0.0
    %596 = vmatpush2.msra.mxu0 0.0
    %597 = vmatprep.mubr.f32.mxu0 0.0
    %598 = vmatmul.mubr.f32.gmra.mxu0 %v509
    %v599 = vpop.f32.mrf.mxu0
    %v600 = vadd.f32 %v531, %v599
    %v601 = vpop.f32.mrf.mxu0
    %602 = vdwg.mxu0
    %603 = vst [vmem:[#allocation10] sm:$0xff] %v600
    %604 = vst [vmem:[%s10] sm:$0xff] %v509
    // Predicated region
    $region54: #{output_regressor.1} parent=1 // pred_check
      _
    $region55: #{output_regressor.1} parent=1 // pred_check_branch
      %606 = sbr.rel (0) target = $region57
    $region56: #{output_regressor.1} parent=1 // pred_region
      %s608 = ssub.s32 128, 128
      %609 = vsyncadd [#allocation4], %s608
      %s611 = sshll.u32 [#allocation10], 4
      %s612 = int_to_ptr.vmem [resolvable:$true] %s611
      %614 = dma.vmem_to_hbm [thread:$0]  %s612, 128, %s9, [#allocation4]
    $region57: #{output_regressor.1} parent=1 // pred_fallthru
      _
    // Predicated region
    $region58: #{output_regressor.1} parent=1 // pred_check
      _
    $region59: #{output_regressor.1} parent=1 // pred_check_branch
      %616 = sbr.rel (0) target = $region61
    $region60: #{output_regressor.1} parent=1 // pred_region
      _
    $region61: #{output_regressor.1} parent=1 // pred_fallthru
      _
    // Predicated region
    $region62: #{output_regressor.1} parent=1 // pred_check
      _
    $region63: #{output_regressor.1} parent=1 // pred_check_branch
      %618 = sbr.rel (0) target = $region65
    $region64: #{output_regressor.1} parent=1 // pred_region
      %619 = dma.done [#allocation4], 128
    $region65: #{output_regressor.1} parent=1 // pred_fallthru
      _
    // Predicated region
    $region66: #{output_regressor.1} parent=1 // pred_check
      _
    $region67: #{output_regressor.1} parent=1 // pred_check_branch
      %621 = sbr.rel (0) target = $region69
    $region68: #{output_regressor.1} parent=1 // pred_region
      _
    $region69: #{output_regressor.1} parent=1 // pred_fallthru
      _
    %622 = vsyncpa [#allocation3], 1
    %623 = vsyncpa [#allocation6], 1
    %624 = vsyncpa [#allocation9], 1
    %625 = vsyncpa [#allocation4], 1

</llo_original>
